<compile_context>
chip_gen: v7x
topology: tpu7x:2x2x1
jax: 0.10.0
libtpu: 0.0.40
codegen_flags: <defaults>
</compile_context>

<pallas_src>
import functools

import jax
import jax.numpy as jnp
from jax import lax
from jax.experimental import pallas as pl
from jax.experimental.pallas import tpu as pltpu


# ----------------------------------------------------------------------------
# Pass 1: conv (single im2col matmul) + bias, plus per-channel BN partial sums.
# Layouts: w (Cout, 9*Cin) bf16, patches tile (9*Cin, T) bf16, outputs f32.
# ----------------------------------------------------------------------------
def _conv_stats_kernel(w_ref, b_ref, p_ref, y_ref, sum_ref, ssq_ref,
                       *, n_valid, tile, mask_tail):
    j = pl.program_id(0)

    @pl.when(j == 0)
    def _init():
        sum_ref[...] = jnp.zeros_like(sum_ref)
        ssq_ref[...] = jnp.zeros_like(ssq_ref)

    # One K = 9*Cin matmul on the MXU (bf16 operands, f32 accumulation).
    y = jnp.dot(w_ref[...], p_ref[...], preferred_element_type=jnp.float32)
    y = y + b_ref[...]                                   # (Cout, T) + (Cout, 1)
    y_ref[...] = y

    # BN partial sums over the lane axis; mask lane-padding columns (if any)
    # so the global statistics only see the real N*H*W positions.
    if mask_tail:
        col = j * tile + lax.broadcasted_iota(jnp.int32, y.shape, 1)
        y = jnp.where(col < n_valid, y, 0.0)
    sum_ref[...] += jnp.sum(y, axis=1, keepdims=True)
    ssq_ref[...] += jnp.sum(y * y, axis=1, keepdims=True)


# ----------------------------------------------------------------------------
# Pass 2: BatchNorm (global batch stats) + ReLU + inverted dropout.
# ----------------------------------------------------------------------------
def _bn_act_dropout_kernel(sum_ref, ssq_ref, g_ref, be_ref, y_ref, rnd_ref, o_ref,
                           *, bn, count, dropout_p, training, eps):
    y = y_ref[...]                                       # (Cout, T) f32

    if bn:
        inv_n = jnp.float32(1.0 / count)
        mean = sum_ref[...] * inv_n                      # (Cout, 1)
        var = jnp.maximum(ssq_ref[...] * inv_n - mean * mean, 0.0)  # biased var (torch train)
        scale = g_ref[...] * lax.rsqrt(var + eps)
        shift = be_ref[...] - mean * scale
        y = y * scale + shift

    y = jnp.maximum(y, 0.0)                              # ReLU

    if training and dropout_p > 0.0:
        # Integer threshold compare on precomputed random int32s (no shifts / int->float casts).
        thresh = jnp.int32(int(round(float(dropout_p) * 2147483647)))
        keep = rnd_ref[...] >= thresh
        y = jnp.where(keep, y * jnp.float32(1.0 / (1.0 - dropout_p)), jnp.float32(0.0))

    o_ref[...] = y.astype(o_ref.dtype)


# ----------------------------------------------------------------------------
# Wrapper
# ----------------------------------------------------------------------------
def custom_cnn_block(x_nchw, conv_w, conv_b, gamma, beta, seed=0, *,
                     batchnorm=True, dropout=0.1, training=True, max_tile=2048):
    """Forward pass of CustomCNNBlock (activation=ReLU). x_nchw: (N, Cin, H, W) float32."""
    N, Cin, H, W = x_nchw.shape
    Cout = conv_w.shape[0]
    NHW = N * H * W
    KC = 9 * Cin

    # ---- im2col built once in the wrapper (single fused XLA pass) ----------
    # patches[t*Cin + c, n*H*W + h*W + w] = x_pad[n, c, h+dh, w+dw],  t = 3*dh + dw
    xp = jnp.pad(x_nchw, ((0, 0), (0, 0), (1, 1), (1, 1)))
    taps = [xp[:, :, dh:dh + H, dw:dw + W] for dh in range(3) for dw in range(3)]
    patches = jnp.stack(taps, axis=0)                    # (9, N, Cin, H, W)
    patches = jnp.transpose(patches, (0, 2, 1, 3, 4))    # (9, Cin, N, H, W)
    patches = patches.reshape(KC, NHW)

    # Lane padding to a multiple of 128 + tile choice along the flattened-spatial axis.
    L = ((NHW + 127) // 128) * 128
    if L != NHW:
        patches = jnp.pad(patches, ((0, 0), (0, L - NHW)))
    cands = [c for c in (4096, 2048, 1024, 512, 256, 128) if c <= max_tile and L % c == 0]
    if L <= max_tile:
        cands.append(L)
    T = max(cands) if cands else L
    num_tiles = L // T

    # Weights OIHW -> (Cout, 9*Cin) matching the patch row order above.
    w2 = jnp.transpose(conv_w, (0, 2, 3, 1)).reshape(Cout, KC)

    # bf16 operands for the MXU; everything else stays f32.
    patches = patches.astype(jnp.bfloat16)
    w2 = w2.astype(jnp.bfloat16)

    b2 = conv_b.reshape(Cout, 1).astype(jnp.float32)
    g2 = gamma.reshape(Cout, 1).astype(jnp.float32)
    be2 = beta.reshape(Cout, 1).astype(jnp.float32)

    # Host-side dropout randomness (one int32 per output element).
    use_dropout = bool(training) and float(dropout) > 0.0
    if use_dropout:
        rnd = jax.random.randint(jax.random.PRNGKey(int(seed)), (Cout, L),
                                 0, jnp.iinfo(jnp.int32).max, dtype=jnp.int32)
    else:
        rnd = jnp.zeros((Cout, L), jnp.int32)

    vmem_limit = 32 * 1024 * 1024  # within v7x's 64 MiB physical; raises v5e's 16 MiB default

    # ---- Pass 1: conv + bias + BN partial sums (reduction axis -> "arbitrary") ----
    kern1 = functools.partial(_conv_stats_kernel, n_valid=NHW, tile=T,
                              mask_tail=(L != NHW))
    y_conv, csum, cssq = pl.pallas_call(
        kern1,
        grid=(num_tiles,),
        in_specs=[
            pl.BlockSpec((Cout, KC), lambda j: (0, 0)),   # weights (VMEM-resident)
            pl.BlockSpec((Cout, 1), lambda j: (0, 0)),    # bias
            pl.BlockSpec((KC, T), lambda j: (0, j)),      # im2col patch tile
        ],
        out_specs=[
            pl.BlockSpec((Cout, T), lambda j: (0, j)),    # conv+bias, lane-dense
            pl.BlockSpec((Cout, 1), lambda j: (0, 0)),    # per-channel sum (accumulator)
            pl.BlockSpec((Cout, 1), lambda j: (0, 0)),    # per-channel sum of squares
        ],
        out_shape=[
            jax.ShapeDtypeStruct((Cout, L), jnp.float32),
            jax.ShapeDtypeStruct((Cout, 1), jnp.float32),
            jax.ShapeDtypeStruct((Cout, 1), jnp.float32),
        ],
        compiler_params=pltpu.CompilerParams(
            dimension_semantics=("arbitrary",),
            vmem_limit_bytes=vmem_limit),
    )(w2, b2, patches)

    # ---- Pass 2: BN finalize + ReLU + dropout (independent tiles -> "parallel") ----
    kern2 = functools.partial(_bn_act_dropout_kernel, bn=bool(batchnorm),
                              count=float(NHW), dropout_p=float(dropout),
                              training=bool(training), eps=1e-5)
    out2d = pl.pallas_call(
        kern2,
        grid=(num_tiles,),
        in_specs=[
            pl.BlockSpec((Cout, 1), lambda j: (0, 0)),    # sum
            pl.BlockSpec((Cout, 1), lambda j: (0, 0)),    # sum of squares
            pl.BlockSpec((Cout, 1), lambda j: (0, 0)),    # gamma
            pl.BlockSpec((Cout, 1), lambda j: (0, 0)),    # beta
            pl.BlockSpec((Cout, T), lambda j: (0, j)),    # conv result tile
            pl.BlockSpec((Cout, T), lambda j: (0, j)),    # dropout random bits tile
        ],
        out_specs=pl.BlockSpec((Cout, T), lambda j: (0, j)),
        out_shape=jax.ShapeDtypeStruct((Cout, L), x_nchw.dtype),
        compiler_params=pltpu.CompilerParams(
            dimension_semantics=("parallel",),
            vmem_limit_bytes=vmem_limit),
    )(csum, cssq, g2, be2, y_conv, rnd)

    # (Cout, L) -> (N, Cout, H, W)
    out = out2d[:, :NHW].reshape(Cout, N, H, W)
    return jnp.transpose(out, (1, 0, 2, 3))


# ----------------------------------------------------------------------------
# Pure-JAX reference (conv + train-mode BN + ReLU, dropout off) for the sanity check.
# ----------------------------------------------------------------------------
def _reference_no_dropout(x_nchw, conv_w, conv_b, gamma, beta, batchnorm, eps=1e-5):
    y = lax.conv_general_dilated(
        x_nchw, conv_w, window_strides=(1, 1), padding="SAME",
        dimension_numbers=("NCHW", "OIHW", "NCHW"))
    y = y + conv_b.reshape(1, -1, 1, 1)
    if batchnorm:
        mean = jnp.mean(y, axis=(0, 2, 3), keepdims=True)
        var = jnp.mean((y - mean) ** 2, axis=(0, 2, 3), keepdims=True)
        y = (y - mean) * lax.rsqrt(var + eps)
        y = y * gamma.reshape(1, -1, 1, 1) + beta.reshape(1, -1, 1, 1)
    return jnp.maximum(y, 0.0)


if __name__ == "__main__":
    # Module config: in_channels=4, out_channels=8, batchnorm=True, activation=nn.ReLU, dropout=0.1
    N, Cin, Cout, H, W = 2, 4, 8, 16, 16

    key = jax.random.PRNGKey(0)
    k_x, k_w, k_b, k_g, k_be = jax.random.split(key, 5)
    x = jax.random.normal(k_x, (N, Cin, H, W), dtype=jnp.float32)
    conv_w = jax.random.normal(k_w, (Cout, Cin, 3, 3), dtype=jnp.float32) * 0.1
    conv_b = jax.random.normal(k_b, (Cout,), dtype=jnp.float32) * 0.1
    gamma = 1.0 + 0.1 * jax.random.normal(k_g, (Cout,), dtype=jnp.float32)
    beta = 0.1 * jax.random.normal(k_be, (Cout,), dtype=jnp.float32)

    # Correctness check of conv + BN + ReLU (dropout off).  max_tile=256 -> 2-tile grid so the
    # pipelined / accumulator path is exercised.  Tolerance loosened for bf16 MXU operands.
    got = custom_cnn_block(x, conv_w, conv_b, gamma, beta, seed=0,
                           batchnorm=True, dropout=0.0, training=True, max_tile=256)
    ref = _reference_no_dropout(x, conv_w, conv_b, gamma, beta, batchnorm=True)
    assert jnp.allclose(got, ref, rtol=3e-2, atol=3e-2), "mismatch vs reference"

    # Full forward (training mode: batch-stat BN + dropout p=0.1).
    out = custom_cnn_block(x, conv_w, conv_b, gamma, beta, seed=42,
                           batchnorm=True, dropout=0.1, training=True, max_tile=256)
    jax.block_until_ready(out)
    print("KERNEL_OK")
</pallas_src>

<mosaic_0001>
module attributes {stable_mosaic.version = 11 : i64} {
  func.func @_conv_stats_kernel(%arg0: i32, %arg1: memref<8x36xbf16, #tpu.memory_space<vmem>>, %arg2: memref<8x1xf32, #tpu.memory_space<vmem>>, %arg3: memref<36x256xbf16, #tpu.memory_space<vmem>>, %arg4: memref<8x256xf32, #tpu.memory_space<vmem>>, %arg5: memref<8x1xf32, #tpu.memory_space<vmem>>, %arg6: memref<8x1xf32, #tpu.memory_space<vmem>>) attributes {dimension_semantics = [#tpu.dimension_semantics<arbitrary>], iteration_bounds = array<i64: 2>, scalar_prefetch = 0 : i64, scratch_operands = 0 : i64, tpu.core_type = #tpu.core_type<tc>, window_params = [{pipeline_mode = #tpu.pipeline_mode<synchronous>, transform_indices = @transform_0, window_bounds = array<i64: 8, 36>}, {pipeline_mode = #tpu.pipeline_mode<synchronous>, transform_indices = @transform_1, window_bounds = array<i64: 8, 1>}, {transform_indices = @transform_2, window_bounds = array<i64: 36, 256>}, {transform_indices = @transform_3, window_bounds = array<i64: 8, 256>}, {pipeline_mode = #tpu.pipeline_mode<synchronous>, transform_indices = @transform_4, window_bounds = array<i64: 8, 1>}, {pipeline_mode = #tpu.pipeline_mode<synchronous>, transform_indices = @transform_5, window_bounds = array<i64: 8, 1>}]} {
    %c0_i32 = arith.constant 0 : i32
    %0 = arith.cmpi eq, %arg0, %c0_i32 : i32
    %1 = arith.extui %0 : i1 to i32
    %c0_i32_0 = arith.constant 0 : i32
    %2 = arith.cmpi ne, %1, %c0_i32_0 : i32
    scf.if %2 {
      %cst_18 = arith.constant 0.000000e+00 : f32
      %21 = vector.broadcast %cst_18 : f32 to vector<8x1xf32>
      %c0_19 = arith.constant 0 : index
      %c0_20 = arith.constant 0 : index
      %22 = vector.load %arg5[%c0_19, %c0_20] : memref<8x1xf32, #tpu.memory_space<vmem>>, vector<8x1xf32>
      tpu.vector_store %arg5[%c0_19, %c0_20], %21 {strides = array<i32>} : memref<8x1xf32, #tpu.memory_space<vmem>>, vector<8x1xf32>,
      %cst_21 = arith.constant 0.000000e+00 : f32
      %23 = vector.broadcast %cst_21 : f32 to vector<8x1xf32>
      %c0_22 = arith.constant 0 : index
      %c0_23 = arith.constant 0 : index
      %24 = vector.load %arg6[%c0_22, %c0_23] : memref<8x1xf32, #tpu.memory_space<vmem>>, vector<8x1xf32>
      tpu.vector_store %arg6[%c0_22, %c0_23], %23 {strides = array<i32>} : memref<8x1xf32, #tpu.memory_space<vmem>>, vector<8x1xf32>,
    } else {
    }
    %c0 = arith.constant 0 : index
    %c0_1 = arith.constant 0 : index
    %3 = vector.load %arg1[%c0, %c0_1] : memref<8x36xbf16, #tpu.memory_space<vmem>>, vector<8x36xbf16>
    %c0_2 = arith.constant 0 : index
    %c0_3 = arith.constant 0 : index
    %4 = vector.load %arg3[%c0_2, %c0_3] : memref<36x256xbf16, #tpu.memory_space<vmem>>, vector<36x256xbf16>
    %cst = arith.constant dense<0.000000e+00> : vector<8x256xf32>
    %5 = tpu.matmul %3, %4, %cst {dimension_numbers = #tpu.dot_dimension_numbers<[1], [0], [0], [1], [0, 0, 1, 1], [], []>} : vector<8x36xbf16>, vector<36x256xbf16>, vector<8x256xf32> -> vector<8x256xf32>
    %c0_4 = arith.constant 0 : index
    %c0_5 = arith.constant 0 : index
    %6 = vector.load %arg2[%c0_4, %c0_5] : memref<8x1xf32, #tpu.memory_space<vmem>>, vector<8x1xf32>
    %7 = vector.broadcast %6 : vector<8x1xf32> to vector<8x256xf32>
    %8 = arith.addf %5, %7 : vector<8x256xf32>
    %c0_6 = arith.constant 0 : index
    %c0_7 = arith.constant 0 : index
    %9 = vector.load %arg4[%c0_6, %c0_7] : memref<8x256xf32, #tpu.memory_space<vmem>>, vector<8x256xf32>
    tpu.vector_store %arg4[%c0_6, %c0_7], %8 {strides = array<i32>} : memref<8x256xf32, #tpu.memory_space<vmem>>, vector<8x256xf32>,
    %c0_8 = arith.constant 0 : index
    %c0_9 = arith.constant 0 : index
    %10 = vector.load %arg5[%c0_8, %c0_9] : memref<8x1xf32, #tpu.memory_space<vmem>>, vector<8x1xf32>
    %cst_10 = arith.constant dense<0.000000e+00> : vector<8xf32>
    %11 = vector.multi_reduction <add>, %8, %cst_10 [1] : vector<8x256xf32> to vector<8xf32>
    %12 = vector.shape_cast %11 : vector<8xf32> to vector<8x1xf32>
    %13 = arith.addf %10, %12 : vector<8x1xf32>
    %c0_11 = arith.constant 0 : index
    %c0_12 = arith.constant 0 : index
    %14 = vector.load %arg5[%c0_11, %c0_12] : memref<8x1xf32, #tpu.memory_space<vmem>>, vector<8x1xf32>
    tpu.vector_store %arg5[%c0_11, %c0_12], %13 {strides = array<i32>} : memref<8x1xf32, #tpu.memory_space<vmem>>, vector<8x1xf32>,
    %c0_13 = arith.constant 0 : index
    %c0_14 = arith.constant 0 : index
    %15 = vector.load %arg6[%c0_13, %c0_14] : memref<8x1xf32, #tpu.memory_space<vmem>>, vector<8x1xf32>
    %16 = arith.mulf %8, %8 : vector<8x256xf32>
    %cst_15 = arith.constant dense<0.000000e+00> : vector<8xf32>
    %17 = vector.multi_reduction <add>, %16, %cst_15 [1] : vector<8x256xf32> to vector<8xf32>
    %18 = vector.shape_cast %17 : vector<8xf32> to vector<8x1xf32>
    %19 = arith.addf %15, %18 : vector<8x1xf32>
    %c0_16 = arith.constant 0 : index
    %c0_17 = arith.constant 0 : index
    %20 = vector.load %arg6[%c0_16, %c0_17] : memref<8x1xf32, #tpu.memory_space<vmem>>, vector<8x1xf32>
    tpu.vector_store %arg6[%c0_16, %c0_17], %19 {strides = array<i32>} : memref<8x1xf32, #tpu.memory_space<vmem>>, vector<8x1xf32>,
    return
  }
  func.func @transform_0(%arg0: i32) -> (i32, i32) {
    %c0_i32 = arith.constant 0 : i32
    %c0_i32_0 = arith.constant 0 : i32
    %c0_i32_1 = arith.constant 0 : i32
    return %c0_i32, %c0_i32_0 : i32, i32
  }
  func.func @transform_1(%arg0: i32) -> (i32, i32) {
    %c0_i32 = arith.constant 0 : i32
    %c0_i32_0 = arith.constant 0 : i32
    %c0_i32_1 = arith.constant 0 : i32
    return %c0_i32, %c0_i32_0 : i32, i32
  }
  func.func @transform_2(%arg0: i32) -> (i32, i32) {
    %c0_i32 = arith.constant 0 : i32
    %c0_i32_0 = arith.constant 0 : i32
    return %c0_i32, %arg0 : i32, i32
  }
  func.func @transform_3(%arg0: i32) -> (i32, i32) {
    %c0_i32 = arith.constant 0 : i32
    %c0_i32_0 = arith.constant 0 : i32
    return %c0_i32, %arg0 : i32, i32
  }
  func.func @transform_4(%arg0: i32) -> (i32, i32) {
    %c0_i32 = arith.constant 0 : i32
    %c0_i32_0 = arith.constant 0 : i32
    %c0_i32_1 = arith.constant 0 : i32
    return %c0_i32, %c0_i32_0 : i32, i32
  }
  func.func @transform_5(%arg0: i32) -> (i32, i32) {
    %c0_i32 = arith.constant 0 : i32
    %c0_i32_0 = arith.constant 0 : i32
    %c0_i32_1 = arith.constant 0 : i32
    return %c0_i32, %c0_i32_0 : i32, i32
  }
}

</mosaic_0001>

<llo_original>
// kernel: tpu_custom_call.1
$region0: #{tpu_custom_call.1}
  #allocation0 [shape = 'u32[]', space=smem, size = 0x4, offset = 0x4, fixed_abs, tag = 'smem constant byte address 0x4 - core index']
  #allocation1 [shape = 'u32[144,128]{1,0:T(1,128)}', space=vmem, size = 0x12000, scoped, tag = 'internal scratch']
  %s0 = inlined_call_operand.vmem [shape: bf16[8,36], index: 0, kind: input, shape index: {}]
  %s1 = inlined_call_operand.vmem [shape: f32[8,1], index: 1, kind: input, shape index: {}]
  %s2 = inlined_call_operand.hbm [shape: bf16[36,512], index: 2, kind: input, shape index: {}]
  %s3 = inlined_call_operand.hbm [shape: f32[8,512], index: 3, kind: output, shape index: {0}]
  %s4 = inlined_call_operand.vmem [shape: f32[8,1], index: 4, kind: output, shape index: {1}]
  %s5 = inlined_call_operand.vmem [shape: f32[8,1], index: 5, kind: output, shape index: {2}]
  %6 = xla_tuple %s3, %s4, %s5
  %s7 = sld [smem:[#allocation0]]
  $region69: #{tpu_custom_call.1} parent=0
    _
  %s9 = ssub.s32 1, %s7
  %s10 = scalar_select 0, %s9, %s7
  $region1: #{tpu_custom_call.1} parent=0
    #allocation2 [shape = 'u8[40960]{0}', space=vmem, size = 0xa000, scoped, tag = 'input window, operand 2']
    #allocation3 [shape = 's32[2]{0}', space=sflag, size = 0x8, scoped, tag = 'scoped memory for tpu_custom_call.1']
    #allocation4 [shape = 's32[2]{0}', space=sflag, size = 0x8, scoped, tag = 'scoped memory for tpu_custom_call.1']
    #allocation5 [shape = 'u8[16384]{0}', space=vmem, size = 0x4000, scoped, tag = 'output window, operand 0']
    %11 = vsyncpa [#allocation3], 0
    %s12 = scalar_lea.sflag [#allocation3], 1
    %13 = vsyncpa %s12, 0
    %14 = vsyncpa [#allocation4], 0
    %s15 = scalar_lea.sflag [#allocation4], 1
    %16 = vsyncpa %s15, 0
    loop: start=0, step=1, limit=4
    $region2: #{tpu_custom_call.1} parent=1 // loop_pre_header
      _
    $region3: #{tpu_custom_call.1} parent=1 // loop_header
      %s18 = sphi 0, %s22
      %p19 = scmp.ge.s32.totalorder %s18, 4
      %s26 = sphi 0, %s26
      %s28 = sphi 0, %s26
      %s29 = sphi 0, %s28
      %s43 = sphi 0, %s29
      %s47 = sphi 0, %s47
      %s49 = sphi 0, %s47
      %s50 = sphi 0, %s49
      %s64 = sphi 0, %s50
      %s70 = sphi 0, %s72
      %s73 = sphi 0, %s70
      %s74 = sphi 0, %s73
      %s90 = sphi 0, %s74
      %s96 = sphi 0, %s98
      %s99 = sphi 0, %s96
      %s100 = sphi 0, %s99
      %s116 = sphi 0, %s100
      %s120 = sphi 0, %s120
      %s122 = sphi 0, %s120
      %s123 = sphi 0, %s122
      %s137 = sphi 0, %s123
      %s141 = sphi 0, %s141
      %s143 = sphi 0, %s141
      %s144 = sphi 0, %s143
      %s158 = sphi 0, %s144
    $region4: #{tpu_custom_call.1} parent=1 // loop_header_branch
      %21 = sbr.rel (%p19) target = $region8
    $region5: #{tpu_custom_call.1} parent=1 // loop_body
      %s23 = ssub.s32 %s18, 1
      %s24 = ssub.s32 %s18, 2
      %s25 = sadd.s32 %s18, 1
      %s27 = sadd.s32 %s26, 1
      %p30 = scmp.eq.s32.totalorder %s18, 1
      %p31 = scmp.ne.s32.totalorder %s26, %s28
      %p32 = scmp.eq.s32.totalorder %s18, 0
      %p33 = por %p31, %p32
      %p34 = scmp.ne.s32.totalorder %s26, %s28
      %p35 = scmp.eq.s32.totalorder %s23, 1
      %p36 = por %p34, %p35
      %p37 = scmp.ne.s32.totalorder %s28, %s29
      %p38 = scmp.eq.s32.totalorder %s23, 0
      %p39 = por %p37, %p38
      %p40 = scmp.ne.s32.totalorder %s28, %s29
      %p41 = scmp.eq.s32.totalorder %s24, 1
      %p42 = por %p40, %p41
      %p44 = scmp.ne.s32.totalorder %s29, %s43
      %p45 = scmp.eq.s32.totalorder %s24, 0
      %p46 = por %p44, %p45
      %s48 = sadd.s32 %s47, 1
      %p51 = scmp.eq.s32.totalorder %s18, 1
      %p52 = scmp.ne.s32.totalorder %s47, %s49
      %p53 = scmp.eq.s32.totalorder %s18, 0
      %p54 = por %p52, %p53
      %p55 = scmp.ne.s32.totalorder %s47, %s49
      %p56 = scmp.eq.s32.totalorder %s23, 1
      %p57 = por %p55, %p56
      %p58 = scmp.ne.s32.totalorder %s49, %s50
      %p59 = scmp.eq.s32.totalorder %s23, 0
      %p60 = por %p58, %p59
      %p61 = scmp.ne.s32.totalorder %s49, %s50
      %p62 = scmp.eq.s32.totalorder %s24, 1
      %p63 = por %p61, %p62
      %p65 = scmp.ne.s32.totalorder %s50, %s64
      %p66 = scmp.eq.s32.totalorder %s24, 0
      %p67 = por %p65, %p66
      %s68 = ssub.s32 %s18, %s25
      %p69 = scmp.eq.s32.totalorder %s68, 0
      %s71 = sadd.s32 %s70, 1
      %s72 = scalar_select %p69, %s70, %s71
      %p75 = pneg %p69
      %p76 = scmp.eq.s32.totalorder %s18, 1
      %p77 = por %p75, %p76
      %p78 = scmp.ne.s32.totalorder %s70, %s73
      %p79 = scmp.eq.s32.totalorder %s18, 0
      %p80 = por %p78, %p79
      %p81 = scmp.ne.s32.totalorder %s70, %s73
      %p82 = scmp.eq.s32.totalorder %s23, 1
      %p83 = por %p81, %p82
      %p84 = scmp.ne.s32.totalorder %s73, %s74
      %p85 = scmp.eq.s32.totalorder %s23, 0
      %p86 = por %p84, %p85
      %p87 = scmp.ne.s32.totalorder %s73, %s74
      %p88 = scmp.eq.s32.totalorder %s24, 1
      %p89 = por %p87, %p88
      %p91 = scmp.ne.s32.totalorder %s74, %s90
      %p92 = scmp.eq.s32.totalorder %s24, 0
      %p93 = por %p91, %p92
      %s94 = ssub.s32 %s18, %s25
      %p95 = scmp.eq.s32.totalorder %s94, 0
      %s97 = sadd.s32 %s96, 1
      %s98 = scalar_select %p95, %s96, %s97
      %p101 = pneg %p95
      %p102 = scmp.eq.s32.totalorder %s18, 1
      %p103 = por %p101, %p102
      %p104 = scmp.ne.s32.totalorder %s96, %s99
      %p105 = scmp.eq.s32.totalorder %s18, 0
      %p106 = por %p104, %p105
      %p107 = scmp.ne.s32.totalorder %s96, %s99
      %p108 = scmp.eq.s32.totalorder %s23, 1
      %p109 = por %p107, %p108
      %p110 = scmp.ne.s32.totalorder %s99, %s100
      %p111 = scmp.eq.s32.totalorder %s23, 0
      %p112 = por %p110, %p111
      %p113 = scmp.ne.s32.totalorder %s99, %s100
      %p114 = scmp.eq.s32.totalorder %s24, 1
      %p115 = por %p113, %p114
      %p117 = scmp.ne.s32.totalorder %s100, %s116
      %p118 = scmp.eq.s32.totalorder %s24, 0
      %p119 = por %p117, %p118
      %s121 = sadd.s32 %s120, 1
      %p124 = scmp.eq.s32.totalorder %s18, 1
      %p125 = scmp.ne.s32.totalorder %s120, %s122
      %p126 = scmp.eq.s32.totalorder %s18, 0
      %p127 = por %p125, %p126
      %p128 = scmp.ne.s32.totalorder %s120, %s122
      %p129 = scmp.eq.s32.totalorder %s23, 1
      %p130 = por %p128, %p129
      %p131 = scmp.ne.s32.totalorder %s122, %s123
      %p132 = scmp.eq.s32.totalorder %s23, 0
      %p133 = por %p131, %p132
      %p134 = scmp.ne.s32.totalorder %s122, %s123
      %p135 = scmp.eq.s32.totalorder %s24, 1
      %p136 = por %p134, %p135
      %p138 = scmp.ne.s32.totalorder %s123, %s137
      %p139 = scmp.eq.s32.totalorder %s24, 0
      %p140 = por %p138, %p139
      %s142 = sadd.s32 %s141, 1
      %p145 = scmp.eq.s32.totalorder %s18, 1
      %p146 = scmp.ne.s32.totalorder %s141, %s143
      %p147 = scmp.eq.s32.totalorder %s18, 0
      %p148 = por %p146, %p147
      %p149 = scmp.ne.s32.totalorder %s141, %s143
      %p150 = scmp.eq.s32.totalorder %s23, 1
      %p151 = por %p149, %p150
      %p152 = scmp.ne.s32.totalorder %s143, %s144
      %p153 = scmp.eq.s32.totalorder %s23, 0
      %p154 = por %p152, %p153
      %p155 = scmp.ne.s32.totalorder %s143, %s144
      %p156 = scmp.eq.s32.totalorder %s24, 1
      %p157 = por %p155, %p156
      %p159 = scmp.ne.s32.totalorder %s144, %s158
      %p160 = scmp.eq.s32.totalorder %s24, 0
      %p161 = por %p159, %p160
      %p162 = scmp.le.s32.totalorder 1, %s18
      %p163 = scmp.lt.s32.totalorder %s18, 3
      %p164 = pnand %p162, %p163
      %p165 = pneg %p164
      // Predicated region
      $region9: #{tpu_custom_call.1} parent=5 // pred_check
        _
      $region10: #{tpu_custom_call.1} parent=5 // pred_check_branch
        %167 = sbr.rel (%p164) target = $region12
      $region11: #{tpu_custom_call.1} parent=5 // pred_region
        %s168 = ssub.s32 %s18, 1
        // Predicated region
        $region13: #{tpu_custom_call.1} parent=11 // pred_check
          %p169 = pneg %p39
        $region14: #{tpu_custom_call.1} parent=11 // pred_check_branch
          %171 = sbr.rel (%p169) target = $region16
        $region15: #{tpu_custom_call.1} parent=11 // pred_region
          _
        $region16: #{tpu_custom_call.1} parent=11 // pred_fallthru
          _
        // Predicated region
        $region17: #{tpu_custom_call.1} parent=11 // pred_check
          %p172 = pneg %p60
        $region18: #{tpu_custom_call.1} parent=11 // pred_check_branch
          %174 = sbr.rel (%p172) target = $region20
        $region19: #{tpu_custom_call.1} parent=11 // pred_region
          _
        $region20: #{tpu_custom_call.1} parent=11 // pred_fallthru
          _
      $region12: #{tpu_custom_call.1} parent=5 // pred_fallthru
        _
      %p175 = scmp.lt.s32.totalorder %s18, 2
      // Predicated region
      $region21: #{tpu_custom_call.1} parent=5 // pred_check
        %p176 = pneg %p175
      $region22: #{tpu_custom_call.1} parent=5 // pred_check_branch
        %178 = sbr.rel (%p176) target = $region24
      $region23: #{tpu_custom_call.1} parent=5 // pred_region
        // Predicated region
        $region25: #{tpu_custom_call.1} parent=23 // pred_check
          %p179 = pneg %p80
        $region26: #{tpu_custom_call.1} parent=23 // pred_check_branch
          %181 = sbr.rel (%p179) target = $region28
        $region27: #{tpu_custom_call.1} parent=23 // pred_region
          %s182 = sand.u32 %s70, 1
          %s183 = scalar_lea.sflag [#allocation3], %s182
          %s184 = sand.u32 %s70, 1
          %s185 = smul.addr %s184, 40
          %s186 = scalar_lea.vmem [#allocation2], %s185
          %s187 = smul.u32 2, %s18
          %s189 = ssub.s32 640, 640
          %190 = vsyncadd %s183, %s189
          %s191 = smul.addr %s187, 64
          %s192 = scalar_lea.hbm %s2, %s191
          %s193 = sshll.u32 %s186, 4
          %s194 = int_to_ptr.vmem [resolvable:$true] %s193
          %199 = dma.hbm_to_vmem [thread:$0]  %s192, 640, %s194, %s183, 256, 128, 8
        $region28: #{tpu_custom_call.1} parent=23 // pred_fallthru
          _
      $region24: #{tpu_custom_call.1} parent=5 // pred_fallthru
        _
      %p200 = scmp.le.s32.totalorder 1, %s18
      %p201 = scmp.lt.s32.totalorder %s18, 3
      %p202 = pnand %p200, %p201
      %p203 = pneg %p202
      // Predicated region
      $region29: #{tpu_custom_call.1} parent=5 // pred_check
        _
      $region30: #{tpu_custom_call.1} parent=5 // pred_check_branch
        %205 = sbr.rel (%p202) target = $region32
      $region31: #{tpu_custom_call.1} parent=5 // pred_region
        %s206 = ssub.s32 %s18, 1
        %s207 = sand.u32 %s73, 1
        %s208 = scalar_lea.sflag [#allocation3], %s207
        %s209 = sand.u32 %s73, 1
        %s210 = smul.addr %s209, 40
        %s211 = scalar_lea.vmem [#allocation2], %s210
        // Predicated region
        $region33: #{tpu_custom_call.1} parent=31 // pred_check
          %p212 = pneg %p86
        $region34: #{tpu_custom_call.1} parent=31 // pred_check_branch
          %214 = sbr.rel (%p212) target = $region36
        $region35: #{tpu_custom_call.1} parent=31 // pred_region
          %215 = dma.done %s208, 640
        $region36: #{tpu_custom_call.1} parent=31 // pred_fallthru
          _
        %p216 = pneg %p39
        %p217 = pneg %p36
        %p218 = pneg %p60
        %p219 = pneg %p57
        %s220 = sand.u32 %s73, 1
        %s221 = scalar_lea.sflag [#allocation3], %s220
        %s222 = sand.u32 %s73, 1
        %s223 = smul.addr %s222, 40
        %s224 = scalar_lea.vmem [#allocation2], %s223
        %p225 = pneg %p86
        %p226 = pneg %p83
        %p227 = pneg %p112
        %p228 = pneg %p109
        %s229 = sand.u32 %s99, 1
        %s230 = scalar_lea.sflag [#allocation4], %s229
        %s231 = sand.u32 %s99, 1
        %s232 = smul.addr %s231, 16
        %s233 = scalar_lea.vmem [#allocation5], %s232
        %p234 = pneg %p133
        %p235 = pneg %p130
        %p236 = pneg %p154
        %p237 = pneg %p151
        %s238 = smul.u32 2, %s23
        %s239 = smul.u32 2, %s23
        %p241 = scmp.eq.s32.totalorder %s23, 0
        // Predicated region
        $region37: #{tpu_custom_call.1} parent=31 // pred_check
          %p242 = pneg %p241
        $region38: #{tpu_custom_call.1} parent=31 // pred_check_branch
          %244 = sbr.rel (%p242) target = $region40
        $region39: #{tpu_custom_call.1} parent=31 // pred_region
          %vm245 = vcmask 7168
          %246 = vst.msk [vmem:[%s4] sm:$0xff] %vm245, 0.0
          %247 = vst.msk [vmem:[%s5] sm:$0xff] %vm245, 0.0
        $region40: #{tpu_custom_call.1} parent=31 // pred_fallthru
          _
        %v248 = vld [vmem:[%s0] sm:$0xf]
        %v249 = vld [vmem:[%s211] sm:$0xff]
        %v250 = vld [vmem:[%s211 + $0x8] sm:$0xff]
        %v251 = vld [vmem:[%s211 + $0x10] sm:$0xff]
        %v252 = vld [vmem:[%s211 + $0x18] sm:$0xff]
        %v253 = vld [vmem:[%s211 + $0x20] sm:$0x33]
        %v254 = vld [vmem:[%s1] sm:$0xff]
        %256 = vset.pattern.permute.xlu0 0
        %257 = vperm.xlu0 %256, %v254
        %v258 = vpop.permute.xlu0 %257
        %v265 = vunpack.c.l.b16 %v249
        %v266 = vunpack.c.h.b16 %v249
        %v267 = vunpack.c.l.b16 %v250
        %v268 = vunpack.c.h.b16 %v250
        %v269 = vunpack.c.l.b16 %v251
        %v270 = vunpack.c.h.b16 %v251
        %v271 = vunpack.c.l.b16 %v252
        %v272 = vunpack.c.h.b16 %v252
        %v273 = vunpack.c.l.b16 %v253
        %v274 = vunpack.c.h.b16 %v253
        %v275 = vpack.c.b16 %v267, %v265
        %v276 = vpack.c.b16 %v268, %v266
        %v277 = vpack.c.b16 %v271, %v269
        %v278 = vpack.c.b16 %v272, %v270
        %v279 = vpack.c.b16 %v273, %v273
        %v280 = vpack.c.b16 %v274, %v274
        %vm285 = vcmask 293888
        %v287 = vsel %vm285, %v248, 0
        %vm289 = vcmask 1041408
        %v291 = vsel %vm289, %v279, 0
        %v294 = vsel %vm289, %v280, 0
        %296 = vmatprep.subr.bf16.mxu0 %v276
        %297 = vmatpush1.bf16.msra.mxu0 %v275
        %298 = vmatprep.subr.bf16.mxu0 %v278
        %299 = vmatpush1.bf16.msra.mxu0 %v277
        %300 = vmatprep.subr.bf16.mxu0 %v294
        %301 = vmatpush1.bf16.msra.mxu0 %v291
        %302 = vmatprep.subr.bf16.mxu0 0
        %303 = vmatpush1.bf16.msra.mxu0 0
        %304 = vmatprep.subr.bf16.mxu0 0
        %305 = vmatpush1.bf16.msra.mxu0 0
        %306 = vmatprep.subr.bf16.mxu0 0
        %307 = vmatpush1.bf16.msra.mxu0 0
        %308 = vmatprep.subr.bf16.mxu0 0
        %309 = vmatpush1.bf16.msra.mxu0 0
        %310 = vmatprep.subr.bf16.mxu0 0
        %311 = vmatpush1.bf16.msra.mxu0 0
        %312 = vmatprep.subr.bf16.mxu0 0
        %313 = vmatpush1.bf16.msra.mxu0 0
        %314 = vmatprep.subr.bf16.mxu0 0
        %315 = vmatpush1.bf16.msra.mxu0 0
        %316 = vmatprep.subr.bf16.mxu0 0
        %317 = vmatpush1.bf16.msra.mxu0 0
        %318 = vmatprep.subr.bf16.mxu0 0
        %319 = vmatpush1.bf16.msra.mxu0 0
        %320 = vmatprep.subr.bf16.mxu0 0
        %321 = vmatpush1.bf16.msra.mxu0 0
        %322 = vmatprep.subr.bf16.mxu0 0
        %323 = vmatpush1.bf16.msra.mxu0 0
        %324 = vmatprep.subr.bf16.mxu0 0
        %325 = vmatpush1.bf16.msra.mxu0 0
        %326 = vmatprep.subr.bf16.mxu0 0
        %327 = vmatpush1.bf16.msra.mxu0 0
        %328 = vmatprep.mubr.bf16.mxu0 0
        %329 = vmatmul.mubr.bf16.gmra.mrb[0].mxu0 %v287
        %v330 = vpop.f32.mrb[0].mxu0
        %v331 = vadd.f32 %v258, %v330
        %v332 = vpop.f32.mrb[0].mxu0
        %v333 = vadd.f32 %v258, %v332
        %v334 = vpop.f32.mrb[0].mxu0
        %v335 = vpop.f32.mrb[0].mxu0
        %336 = vdwg.mxu0
        %337 = vst [vmem:[%s233] sm:$0xff] %v331
        %338 = vst [vmem:[%s233 + $0x8] sm:$0xff] %v333
        %v339 = vld [vmem:[%s4] sm:$0xff]
        %v340 = vadd.f32 %v331, %v333
        %341 = vadd.xlane.f32.xlu0 %v340
        %v342 = vpop.xlane.xlu0 %341
        %v343 = vadd.f32 %v339, %v342
        %vm344 = vcmask 7168
        %345 = vst.msk [vmem:[%s4] sm:$0xff] %vm344, %v343
        %v346 = vld [vmem:[%s5] sm:$0xff]
        %v347 = vmul.f32 %v331, %v331
        %v348 = vmul.f32 %v333, %v333
        %v349 = vadd.f32 %v347, %v348
        %350 = vadd.xlane.f32.xlu0 %v349
        %v351 = vpop.xlane.xlu0 %350
        %v352 = vadd.f32 %v346, %v351
        %353 = vst.msk [vmem:[%s5] sm:$0xff] %vm344, %v352
        %s354 = sand.u32 %s99, 1
        %s355 = scalar_lea.sflag [#allocation4], %s354
        %s356 = sand.u32 %s99, 1
        %s357 = smul.addr %s356, 16
        %s358 = scalar_lea.vmem [#allocation5], %s357
        // Predicated region
        $region41: #{tpu_custom_call.1} parent=31 // pred_check
          %p359 = pneg %p109
        $region42: #{tpu_custom_call.1} parent=31 // pred_check_branch
          %361 = sbr.rel (%p359) target = $region44
        $region43: #{tpu_custom_call.1} parent=31 // pred_region
          %s362 = smul.u32 2, %s23
          %s364 = ssub.s32 256, 256
          %365 = vsyncadd %s355, %s364
          %s366 = smul.addr %s362, 128
          %s367 = scalar_lea.hbm %s3, %s366
          %s369 = sshll.u32 %s358, 4
          %s370 = int_to_ptr.vmem [resolvable:$true] %s369
          %372 = dma.vmem_to_hbm [thread:$0]  %s370, 256, %s367, %s355
        $region44: #{tpu_custom_call.1} parent=31 // pred_fallthru
          _
        // Predicated region
        $region45: #{tpu_custom_call.1} parent=31 // pred_check
          %p373 = pneg %p130
        $region46: #{tpu_custom_call.1} parent=31 // pred_check_branch
          %375 = sbr.rel (%p373) target = $region48
        $region47: #{tpu_custom_call.1} parent=31 // pred_region
          _
        $region48: #{tpu_custom_call.1} parent=31 // pred_fallthru
          _
        // Predicated region
        $region49: #{tpu_custom_call.1} parent=31 // pred_check
          %p376 = pneg %p151
        $region50: #{tpu_custom_call.1} parent=31 // pred_check_branch
          %378 = sbr.rel (%p376) target = $region52
        $region51: #{tpu_custom_call.1} parent=31 // pred_region
          _
        $region52: #{tpu_custom_call.1} parent=31 // pred_fallthru
          _
        // Predicated region
        $region53: #{tpu_custom_call.1} parent=31 // pred_check
          %p379 = pneg %p130
        $region54: #{tpu_custom_call.1} parent=31 // pred_check_branch
          %381 = sbr.rel (%p379) target = $region56
        $region55: #{tpu_custom_call.1} parent=31 // pred_region
          _
        $region56: #{tpu_custom_call.1} parent=31 // pred_fallthru
          _
        // Predicated region
        $region57: #{tpu_custom_call.1} parent=31 // pred_check
          %p382 = pneg %p151
        $region58: #{tpu_custom_call.1} parent=31 // pred_check_branch
          %384 = sbr.rel (%p382) target = $region60
        $region59: #{tpu_custom_call.1} parent=31 // pred_region
          _
        $region60: #{tpu_custom_call.1} parent=31 // pred_fallthru
          _
      $region32: #{tpu_custom_call.1} parent=5 // pred_fallthru
        _
      %p385 = scmp.le.s32.totalorder 2, %s18
      // Predicated region
      $region61: #{tpu_custom_call.1} parent=5 // pred_check
        %p386 = pneg %p385
      $region62: #{tpu_custom_call.1} parent=5 // pred_check_branch
        %388 = sbr.rel (%p386) target = $region64
      $region63: #{tpu_custom_call.1} parent=5 // pred_region
        %s389 = ssub.s32 %s18, 2
        // Predicated region
        $region65: #{tpu_custom_call.1} parent=63 // pred_check
          %p390 = pneg %p115
        $region66: #{tpu_custom_call.1} parent=63 // pred_check_branch
          %392 = sbr.rel (%p390) target = $region68
        $region67: #{tpu_custom_call.1} parent=63 // pred_region
          %s393 = sand.u32 %s100, 1
          %s394 = scalar_lea.sflag [#allocation4], %s393
          %s395 = sand.u32 %s100, 1
          %s396 = smul.addr %s395, 16
          %s397 = scalar_lea.vmem [#allocation5], %s396
          %398 = dma.done %s394, 256
        $region68: #{tpu_custom_call.1} parent=63 // pred_fallthru
          _
      $region64: #{tpu_custom_call.1} parent=5 // pred_fallthru
        _
    $region6: #{tpu_custom_call.1} parent=1 // loop_footer
      %s22 = sadd.s32 1, %s18
    $region7: #{tpu_custom_call.1} parent=1 // loop_footer_branch
      %17 = sbr.rel target = $region3
    $region8: #{tpu_custom_call.1} parent=1 // loop_exit
      _
    %399 = vsyncpa [#allocation3], 1
    %s400 = scalar_lea.sflag [#allocation3], 1
    %401 = vsyncpa %s400, 1
    %402 = vsyncpa [#allocation4], 1
    %s403 = scalar_lea.sflag [#allocation4], 1
    %404 = vsyncpa %s403, 1

</llo_original>
